<compile_context>
chip_gen: v7x
topology: tpu7x:2x2x1
jax: 0.10.0
libtpu: 0.0.40
codegen_flags: <defaults>
</compile_context>

<pallas_src>
import functools

import jax
import jax.numpy as jnp
from jax import lax
from jax.experimental import pallas as pl
from jax.experimental.pallas import tpu as pltpu


def _round_up(x, m):
    return (x + m - 1) // m * m


# ---------------------------------------------------------------------------
# Stage 1: beta_t = softmax(alpha @ rho.T, axis=1)   (weight-only, runs once)
# ---------------------------------------------------------------------------
def _beta_kernel(alpha_ref, rho_ref, beta_ref, *, valid_v):
    a = alpha_ref[...].astype(jnp.bfloat16)            # (T, E)
    r = rho_ref[...].astype(jnp.bfloat16)              # (Vp, E)  (zero-padded rows)
    # logit = alpha @ rho.T -> (T, Vp), contract on embedding dim (MXU, bf16)
    logit = lax.dot_general(
        a, r,
        dimension_numbers=(((1,), (1,)), ((), ())),
        preferred_element_type=jnp.float32,
    )
    t, vp = logit.shape
    col = lax.broadcasted_iota(jnp.int32, (t, vp), 1)
    logit = jnp.where(col < valid_v, logit, -1e30)      # padded vocab lanes -> 0 prob
    m = jnp.max(logit, axis=1, keepdims=True)
    e = jnp.exp(logit - m)
    denom = jnp.sum(e, axis=1, keepdims=True)
    beta_t = e * pl.reciprocal(denom, approx=True)      # EUP slot, ~free
    beta_ref[...] = beta_t.astype(jnp.bfloat16)


# ---------------------------------------------------------------------------
# Stage 2: per batch-tile decode + recon partial sum
# ---------------------------------------------------------------------------
def _decode_kernel(theta_ref, beta_ref, bows_ref, preds_ref, loss_ref):
    theta = theta_ref[...].astype(jnp.bfloat16)         # (TB, T)
    beta_t = beta_ref[...]                              # (T, Vp) bf16, resident
    res = jnp.dot(theta, beta_t, preferred_element_type=jnp.float32)
    preds = jnp.log(res + 1e-6)                         # (TB, Vp) f32
    preds_ref[...] = preds
    bows = bows_ref[...]                                # zero in padded rows/lanes
    tile_sum = -jnp.sum(preds * bows)                   # exact partial recon sum
    loss_ref[...] = jnp.full(loss_ref.shape, tile_sum, jnp.float32)


# ---------------------------------------------------------------------------
# Wrapper mirroring ETM_ICD_Decoder.forward
# ---------------------------------------------------------------------------
def etm_icd_decoder_forward(bows, normalized_bows, theta, kl_theta,
                            alpha, rho, aggregate=True, batch_tile=256):
    """`normalized_bows` is unused in the PyTorch forward as well."""
    del normalized_bows
    B, V = bows.shape
    T, E = alpha.shape
    assert rho.shape == (V, E)
    assert theta.shape == (B, T)

    f32 = jnp.float32
    Vp = _round_up(V, 128)                              # lane-dense vocab
    tb = min(_round_up(batch_tile, 8), _round_up(B, 8)) # batch tile (multiple of 8)
    Bp = _round_up(B, tb)
    nbt = Bp // tb

    alpha_f = alpha.astype(f32)
    rho_p = jnp.pad(rho.astype(f32), ((0, Vp - V), (0, 0)))
    theta_p = jnp.pad(theta.astype(f32), ((0, Bp - B), (0, 0)))
    bows_p = jnp.pad(bows.astype(f32), ((0, Bp - B), (0, Vp - V)))

    # --- Stage 1: beta_t (T, Vp), bf16, computed once (not in the batch path) ---
    beta_t = pl.pallas_call(
        functools.partial(_beta_kernel, valid_v=V),
        out_shape=jax.ShapeDtypeStruct((T, Vp), jnp.bfloat16),
    )(alpha_f, rho_p)

    # --- Stage 2: batch-tiled streaming decode + per-tile recon partial sums ---
    preds_p, loss_parts = pl.pallas_call(
        _decode_kernel,
        out_shape=(
            jax.ShapeDtypeStruct((Bp, Vp), f32),        # preds (padded)
            jax.ShapeDtypeStruct((nbt, 8, 128), f32),   # per-tile partial sums
        ),
        grid_spec=pltpu.PrefetchScalarGridSpec(
            num_scalar_prefetch=0,
            grid=(nbt,),
            in_specs=[
                pl.BlockSpec((tb, T), lambda i: (i, 0)),     # theta tile
                pl.BlockSpec((T, Vp), lambda i: (0, 0)),     # beta_t (resident)
                pl.BlockSpec((tb, Vp), lambda i: (i, 0)),    # bows tile
            ],
            out_specs=[
                pl.BlockSpec((tb, Vp), lambda i: (i, 0)),    # preds tile (lane-dense)
                pl.BlockSpec((1, 8, 128), lambda i: (i, 0, 0)),
            ],
        ),
        compiler_params=pltpu.CompilerParams(
            dimension_semantics=("parallel",),               # shard tiles across TCs
            vmem_limit_bytes=32 * 1024 * 1024,
        ),
    )(theta_p, beta_t, bows_p)

    preds = preds_p[:B, :V]
    if aggregate:
        recon_loss = jnp.sum(loss_parts[:, 0, 0]) / jnp.float32(B)
    else:
        # TODO(synk): per-sample recon could be fused as an extra lane-aligned
        # (Bp, 128) kernel output; for now compute it from the returned preds.
        recon_loss = -jnp.sum(preds * bows.astype(f32), axis=1)
    return recon_loss, kl_theta, preds


if __name__ == "__main__":
    # Small shapes consistent with the module's structure
    # (module defaults: emsize=768, num_topics=25, vocab_size=1102).
    # vocab deliberately NOT a multiple of 128 and batch spans 3 tiles so the
    # padding / multi-tile / loss-partial paths are all exercised.
    batch = 24
    num_topics = 8
    emsize = 128
    vocab_size = 200

    key = jax.random.PRNGKey(0)
    k_alpha, k_rho, k_theta, k_bows = jax.random.split(key, 4)

    alpha = jax.random.normal(k_alpha, (num_topics, emsize), dtype=jnp.float32) * 0.1
    rho = jax.random.normal(k_rho, (vocab_size, emsize), dtype=jnp.float32) * 0.6
    theta = jax.nn.softmax(
        jax.random.normal(k_theta, (batch, num_topics), dtype=jnp.float32), axis=-1)
    bows = jax.random.uniform(k_bows, (batch, vocab_size), dtype=jnp.float32,
                              minval=0.0, maxval=5.0)
    normalized_bows = bows / jnp.sum(bows, axis=1, keepdims=True)
    kl_theta = jnp.float32(0.123)

    recon_loss, kl_out, preds = etm_icd_decoder_forward(
        bows, normalized_bows, theta, kl_theta, alpha, rho,
        aggregate=True, batch_tile=8)   # tiny tile -> multi-tile grid in the demo
    jax.block_until_ready((recon_loss, kl_out, preds))

    # Reference check in plain f32 JAX (kernel uses bf16 MXU operands -> relaxed tol)
    beta_t_ref = jax.nn.softmax(alpha @ rho.T, axis=1)
    preds_ref = jnp.log(theta @ beta_t_ref + 1e-6)
    recon_ref = jnp.mean(-jnp.sum(preds_ref * bows, axis=1))

    assert preds.shape == (batch, vocab_size)
    assert jnp.allclose(preds, preds_ref, atol=5e-2, rtol=5e-2), \
        float(jnp.max(jnp.abs(preds - preds_ref)))
    assert jnp.allclose(recon_loss, recon_ref, atol=5.0, rtol=2e-2), \
        (float(recon_loss), float(recon_ref))
    assert kl_out == kl_theta

    print("KERNEL_OK")
</pallas_src>

<mosaic_0001>
module attributes {stable_mosaic.version = 11 : i64} {
  func.func @_beta_kernel(%arg0: memref<8x128xf32, #tpu.memory_space<vmem>>, %arg1: memref<256x128xf32, #tpu.memory_space<vmem>>, %arg2: memref<8x256xbf16, #tpu.memory_space<vmem>>) attributes {dimension_semantics = [], scalar_prefetch = 0 : i64, scratch_operands = 0 : i64, tpu.core_type = #tpu.core_type<tc>} {
    %c0 = arith.constant 0 : index
    %c0_0 = arith.constant 0 : index
    %0 = vector.load %arg0[%c0, %c0_0] : memref<8x128xf32, #tpu.memory_space<vmem>>, vector<8x128xf32>
    %1 = arith.truncf %0 : vector<8x128xf32> to vector<8x128xbf16>
    %c0_1 = arith.constant 0 : index
    %c0_2 = arith.constant 0 : index
    %2 = vector.load %arg1[%c0_1, %c0_2] : memref<256x128xf32, #tpu.memory_space<vmem>>, vector<256x128xf32>
    %3 = arith.truncf %2 : vector<256x128xf32> to vector<256x128xbf16>
    %cst = arith.constant dense<0.000000e+00> : vector<8x256xf32>
    %4 = tpu.matmul %1, %3, %cst {dimension_numbers = #tpu.dot_dimension_numbers<[1], [1], [0], [0], [0, 0, 1, 0], [], []>} : vector<8x128xbf16>, vector<256x128xbf16>, vector<8x256xf32> -> vector<8x256xf32>
    %5 = tpu.iota {dimensions = array<i32: 1>} : vector<8x256xi32>
    %c200_i32 = arith.constant 200 : i32
    %6 = vector.broadcast %c200_i32 : i32 to vector<8x256xi32>
    %7 = arith.cmpi slt, %5, %6 : vector<8x256xi32>
    %cst_3 = arith.constant -1.000000e+30 : f32
    %8 = vector.broadcast %cst_3 : f32 to vector<8x256xf32>
    %9 = arith.select %7, %4, %8 : vector<8x256xi1>, vector<8x256xf32>
    %cst_4 = arith.constant dense<0xFF800000> : vector<8xf32>
    %10 = vector.multi_reduction <maximumf>, %9, %cst_4 [1] : vector<8x256xf32> to vector<8xf32>
    %11 = vector.shape_cast %10 : vector<8xf32> to vector<8x1xf32>
    %12 = vector.broadcast %11 : vector<8x1xf32> to vector<8x256xf32>
    %13 = arith.subf %9, %12 : vector<8x256xf32>
    %14 = math.exp %13 : vector<8x256xf32>
    %cst_5 = arith.constant dense<0.000000e+00> : vector<8xf32>
    %15 = vector.multi_reduction <add>, %14, %cst_5 [1] : vector<8x256xf32> to vector<8xf32>
    %16 = vector.shape_cast %15 : vector<8xf32> to vector<8x1xf32>
    %17 = tpu.reciprocal %16 {approx = true} : vector<8x1xf32> -> vector<8x1xf32>
    %18 = vector.broadcast %17 : vector<8x1xf32> to vector<8x256xf32>
    %19 = arith.mulf %14, %18 : vector<8x256xf32>
    %20 = arith.truncf %19 : vector<8x256xf32> to vector<8x256xbf16>
    %c0_6 = arith.constant 0 : index
    %c0_7 = arith.constant 0 : index
    %21 = vector.load %arg2[%c0_6, %c0_7] : memref<8x256xbf16, #tpu.memory_space<vmem>>, vector<8x256xbf16>
    tpu.vector_store %arg2[%c0_6, %c0_7], %20 {strides = array<i32>} : memref<8x256xbf16, #tpu.memory_space<vmem>>, vector<8x256xbf16>,
    return
  }
}

</mosaic_0001>

<llo_original>
// kernel: tpu_custom_call.1
$region0: #{tpu_custom_call.1}
  #allocation0 [shape = 'u32[]', space=smem, size = 0x4, offset = 0x4, fixed_abs, tag = 'smem constant byte address 0x4 - core index']
  #allocation1 [shape = 'u32[144,128]{1,0:T(1,128)}', space=vmem, size = 0x12000, scoped, tag = 'internal scratch']
  %s0 = inlined_call_operand.hbm [shape: f32[8,128], index: 0, kind: input, shape index: {}]
  %s1 = inlined_call_operand.hbm [shape: f32[256,128], index: 1, kind: input, shape index: {}]
  %s2 = inlined_call_operand.hbm [shape: bf16[8,256], index: 2, kind: output, shape index: {}]
  %s3 = sld [smem:[#allocation0]]
  $region26: #{tpu_custom_call.1} parent=0
    _
  %s5 = ssub.s32 1, %s3
  %s6 = scalar_select 0, %s5, %s3
  $region1: #{tpu_custom_call.1} parent=0
    #allocation2 [shape = 'u8[4096]{0}', space=vmem, size = 0x1000, scoped, tag = 'input window, operand 0, single buffered']
    #allocation3 [shape = 's32[1]{0}', space=sflag, size = 0x4, scoped, tag = 'scoped memory for tpu_custom_call.1']
    #allocation4 [shape = 's32[1]{0}', space=sflag, size = 0x4, scoped, tag = 'scoped memory for tpu_custom_call.1']
    #allocation5 [shape = 'u8[131072]{0}', space=vmem, size = 0x20000, scoped, tag = 'input window, operand 1, single buffered']
    #allocation6 [shape = 's32[1]{0}', space=sflag, size = 0x4, scoped, tag = 'scoped memory for tpu_custom_call.1']
    #allocation7 [shape = 'u8[4096]{0}', space=vmem, size = 0x1000, scoped, tag = 'output window, operand 0, single buffered']
    %7 = vsyncpa [#allocation3], 0
    %8 = vsyncpa [#allocation6], 0
    %9 = vsyncpa [#allocation4], 0
    // Predicated region
    $region2: #{tpu_custom_call.1} parent=1 // pred_check
      _
    $region3: #{tpu_custom_call.1} parent=1 // pred_check_branch
      %11 = sbr.rel (0) target = $region5
    $region4: #{tpu_custom_call.1} parent=1 // pred_region
      %s13 = ssub.s32 128, 128
      %14 = vsyncadd [#allocation3], %s13
      %s16 = sshll.u32 [#allocation2], 4
      %s17 = int_to_ptr.vmem [resolvable:$true] %s16
      %19 = dma.hbm_to_vmem [thread:$0]  %s0, 128, %s17, [#allocation3]
    $region5: #{tpu_custom_call.1} parent=1 // pred_fallthru
      _
    // Predicated region
    $region6: #{tpu_custom_call.1} parent=1 // pred_check
      _
    $region7: #{tpu_custom_call.1} parent=1 // pred_check_branch
      %21 = sbr.rel (0) target = $region9
    $region8: #{tpu_custom_call.1} parent=1 // pred_region
      %s23 = ssub.s32 4096, 4096
      %24 = vsyncadd [#allocation6], %s23
      %s25 = sshll.u32 [#allocation5], 4
      %s26 = int_to_ptr.vmem [resolvable:$true] %s25
      %31 = dma.hbm_to_vmem [thread:$0]  %s1, 4096, %s26, [#allocation6], 128, 128, 8
    $region9: #{tpu_custom_call.1} parent=1 // pred_fallthru
      _
    // Predicated region
    $region10: #{tpu_custom_call.1} parent=1 // pred_check
      _
    $region11: #{tpu_custom_call.1} parent=1 // pred_check_branch
      %33 = sbr.rel (0) target = $region13
    $region12: #{tpu_custom_call.1} parent=1 // pred_region
      %34 = dma.done [#allocation3], 128
    $region13: #{tpu_custom_call.1} parent=1 // pred_fallthru
      _
    // Predicated region
    $region14: #{tpu_custom_call.1} parent=1 // pred_check
      _
    $region15: #{tpu_custom_call.1} parent=1 // pred_check_branch
      %36 = sbr.rel (0) target = $region17
    $region16: #{tpu_custom_call.1} parent=1 // pred_region
      %37 = dma.done [#allocation6], 4096
    $region17: #{tpu_custom_call.1} parent=1 // pred_fallthru
      _
    %v39 = vld [vmem:[#allocation2] sm:$0xff]
    %v40 = vpack.c.bf16 %v39, %v39
    %v41 = vld [vmem:[#allocation5] sm:$0xff]
    %v42 = vld [vmem:[#allocation5 + $0x8] sm:$0xff]
    %v43 = vld [vmem:[#allocation5 + $0x10] sm:$0xff]
    %v44 = vld [vmem:[#allocation5 + $0x18] sm:$0xff]
    %v45 = vld [vmem:[#allocation5 + $0x20] sm:$0xff]
    %v46 = vld [vmem:[#allocation5 + $0x28] sm:$0xff]
    %v47 = vld [vmem:[#allocation5 + $0x30] sm:$0xff]
    %v48 = vld [vmem:[#allocation5 + $0x38] sm:$0xff]
    %v49 = vld [vmem:[#allocation5 + $0x40] sm:$0xff]
    %v50 = vld [vmem:[#allocation5 + $0x48] sm:$0xff]
    %v51 = vld [vmem:[#allocation5 + $0x50] sm:$0xff]
    %v52 = vld [vmem:[#allocation5 + $0x58] sm:$0xff]
    %v53 = vld [vmem:[#allocation5 + $0x60] sm:$0xff]
    %v54 = vld [vmem:[#allocation5 + $0x68] sm:$0xff]
    %v55 = vld [vmem:[#allocation5 + $0x70] sm:$0xff]
    %v56 = vld [vmem:[#allocation5 + $0x78] sm:$0xff]
    %v57 = vld [vmem:[#allocation5 + $0x80] sm:$0xff]
    %v58 = vld [vmem:[#allocation5 + $0x88] sm:$0xff]
    %v59 = vld [vmem:[#allocation5 + $0x90] sm:$0xff]
    %v60 = vld [vmem:[#allocation5 + $0x98] sm:$0xff]
    %v61 = vld [vmem:[#allocation5 + $0xa0] sm:$0xff]
    %v62 = vld [vmem:[#allocation5 + $0xa8] sm:$0xff]
    %v63 = vld [vmem:[#allocation5 + $0xb0] sm:$0xff]
    %v64 = vld [vmem:[#allocation5 + $0xb8] sm:$0xff]
    %v65 = vld [vmem:[#allocation5 + $0xc0] sm:$0xff]
    %v66 = vld [vmem:[#allocation5 + $0xc8] sm:$0xff]
    %v67 = vld [vmem:[#allocation5 + $0xd0] sm:$0xff]
    %v68 = vld [vmem:[#allocation5 + $0xd8] sm:$0xff]
    %v69 = vld [vmem:[#allocation5 + $0xe0] sm:$0xff]
    %v70 = vld [vmem:[#allocation5 + $0xe8] sm:$0xff]
    %v71 = vld [vmem:[#allocation5 + $0xf0] sm:$0xff]
    %v72 = vld [vmem:[#allocation5 + $0xf8] sm:$0xff]
    %v73 = vpack.c.bf16 %v42, %v41
    %v74 = vpack.c.bf16 %v44, %v43
    %v75 = vpack.c.bf16 %v46, %v45
    %v76 = vpack.c.bf16 %v48, %v47
    %v77 = vpack.c.bf16 %v50, %v49
    %v78 = vpack.c.bf16 %v52, %v51
    %v79 = vpack.c.bf16 %v54, %v53
    %v80 = vpack.c.bf16 %v56, %v55
    %v81 = vpack.c.bf16 %v58, %v57
    %v82 = vpack.c.bf16 %v60, %v59
    %v83 = vpack.c.bf16 %v62, %v61
    %v84 = vpack.c.bf16 %v64, %v63
    %v85 = vpack.c.bf16 %v66, %v65
    %v86 = vpack.c.bf16 %v68, %v67
    %v87 = vpack.c.bf16 %v70, %v69
    %v88 = vpack.c.bf16 %v72, %v71
    %89 = vmatprep.subr.bf16.mxu0 0
    %90 = vmatpush1.bf16.xpose.msra.mxu0 %v73
    %91 = vmatprep.subr.bf16.mxu0 0
    %92 = vmatpush1.bf16.xpose.msra.mxu0 %v74
    %93 = vmatprep.subr.bf16.mxu0 0
    %94 = vmatpush1.bf16.xpose.msra.mxu0 %v75
    %95 = vmatprep.subr.bf16.mxu0 0
    %96 = vmatpush1.bf16.xpose.msra.mxu0 %v76
    %97 = vmatprep.subr.bf16.mxu0 0
    %98 = vmatpush1.bf16.xpose.msra.mxu0 %v77
    %99 = vmatprep.subr.bf16.mxu0 0
    %100 = vmatpush1.bf16.xpose.msra.mxu0 %v78
    %101 = vmatprep.subr.bf16.mxu0 0
    %102 = vmatpush1.bf16.xpose.msra.mxu0 %v79
    %103 = vmatprep.subr.bf16.mxu0 0
    %104 = vmatpush1.bf16.xpose.msra.mxu0 %v80
    %105 = vmatprep.subr.bf16.mxu0 0
    %106 = vmatpush1.bf16.xpose.msra.mxu0 %v81
    %107 = vmatprep.subr.bf16.mxu0 0
    %108 = vmatpush1.bf16.xpose.msra.mxu0 %v82
    %109 = vmatprep.subr.bf16.mxu0 0
    %110 = vmatpush1.bf16.xpose.msra.mxu0 %v83
    %111 = vmatprep.subr.bf16.mxu0 0
    %112 = vmatpush1.bf16.xpose.msra.mxu0 %v84
    %113 = vmatprep.subr.bf16.mxu0 0
    %114 = vmatpush1.bf16.xpose.msra.mxu0 %v85
    %115 = vmatprep.subr.bf16.mxu0 0
    %116 = vmatpush1.bf16.xpose.msra.mxu0 %v86
    %117 = vmatprep.subr.bf16.mxu0 0
    %118 = vmatpush1.bf16.xpose.msra.mxu0 %v87
    %119 = vmatprep.subr.bf16.mxu0 0
    %120 = vmatpush1.bf16.xpose.msra.mxu0 %v88
    %121 = vmatprep.mubr.bf16.mxu0 0
    %122 = vmatmul.mubr.bf16.gmra.mrb[0].mxu0 %v40
    %v123 = vpop.f32.mrb[0].mxu0
    %v124 = vadd.f32 0.0, %v123
    %v125 = vpop.f32.mrb[0].mxu0
    %v126 = vadd.f32 0.0, %v125
    %v127 = vpop.f32.mrb[0].mxu0
    %v128 = vpop.f32.mrb[0].mxu0
    %129 = vdwg.mxu0
    %v130 = vlaneseq
    %v131 = vand.u32 %v130, 127
    %v132 = vadd.s32 %v131, 128
    %vm133 = vcmp.lt.s32.totalorder %v131, 200
    %vm134 = vcmp.lt.s32.totalorder %v132, 200
    %v135 = vsel %vm133, %v124, -1e+30
    %v136 = vsel %vm134, %v126, -1e+30
    %v137 = vmax.f32 %v135, %v136
    %138 = vmax.xlane.f32.xlu0 %v137
    %v139 = vpop.xlane.xlu0 %138
    %v140 = vsub.f32 %v135, %v139
    %v141 = vsub.f32 %v136, %v139
    %v142 = vmul.f32 %v140, 1.442695
    %v143 = vpow.pop %v142
    %v144 = vmul.f32 %v141, 1.442695
    %v145 = vpow.pop %v144
    %v146 = vadd.f32 %v143, %v145
    %147 = vadd.xlane.f32.xlu0 %v146
    %v148 = vpop.xlane.xlu0 %147
    %v149 = vrcp.pop %v148
    %v150 = vmul.f32 %v143, %v149
    %v151 = vmul.f32 %v145, %v149
    %v152 = vpack.c.bf16 %v150, %v150
    %v153 = vpack.c.bf16 %v151, %v151
    %v156 = vunpack.c.l.b16 %v152
    %v157 = vunpack.c.l.b16 %v153
    %v158 = vpack.c.b16 %v157, %v156
    %160 = vst [vmem:[#allocation7] sm:$0xff] %v158
    // Predicated region
    $region18: #{tpu_custom_call.1} parent=1 // pred_check
      _
    $region19: #{tpu_custom_call.1} parent=1 // pred_check_branch
      %162 = sbr.rel (0) target = $region21
    $region20: #{tpu_custom_call.1} parent=1 // pred_region
      %s164 = ssub.s32 128, 128
      %165 = vsyncadd [#allocation4], %s164
      %s167 = sshll.u32 [#allocation7], 4
      %s168 = int_to_ptr.vmem [resolvable:$true] %s167
      %170 = dma.vmem_to_hbm [thread:$0]  %s168, 128, %s2, [#allocation4]
    $region21: #{tpu_custom_call.1} parent=1 // pred_fallthru
      _
    // Predicated region
    $region22: #{tpu_custom_call.1} parent=1 // pred_check
      _
    $region23: #{tpu_custom_call.1} parent=1 // pred_check_branch
      %172 = sbr.rel (0) target = $region25
    $region24: #{tpu_custom_call.1} parent=1 // pred_region
      %173 = dma.done [#allocation4], 128
    $region25: #{tpu_custom_call.1} parent=1 // pred_fallthru
      _
    %174 = vsyncpa [#allocation3], 1
    %175 = vsyncpa [#allocation6], 1
    %176 = vsyncpa [#allocation4], 1

</llo_original>
